<compile_context>
chip_gen: v7x
topology: tpu7x:2x2x1
jax: 0.10.0
libtpu: 0.0.40
codegen_flags: <defaults>
</compile_context>

<pallas_src>
import numpy as np
import jax
import jax.numpy as jnp
from jax import lax
from jax.experimental import pallas as pl
from jax.experimental.pallas import tpu as pltpu

# Folded direction set: each direction pairs with its negation, so these 4
# cover all 8 "neighbor - center" taps of the original conv.
_DIRS = ((0, 1), (1, -1), (1, 0), (1, 1))

# ~2 MiB of f32 pixels per input block (review: raise from ~1 MiB now that the
# roll rewrite removed the nine block-sized relayout temps).
_BLOCK_PIXELS = (2 * 1024 * 1024) // 4


def _plain_taps(d, H, W):
    """Shifted copies of d (block (TB, H, W)) for the 4 folded directions."""
    down = pltpu.roll(d, shift=H - 1, axis=1)              # d[r+1, c]
    return [
        pltpu.roll(d, shift=W - 1, axis=2),                # (0,+1): d[r,   c+1]
        pltpu.roll(down, shift=1, axis=2),                 # (1,-1): d[r+1, c-1]
        down,                                              # (1, 0): d[r+1, c  ]
        pltpu.roll(down, shift=W - 1, axis=2),             # (1,+1): d[r+1, c+1]
    ]


def _packed_taps(d, W):
    """Shifted copies of d for the lane-packed (TB, H*W//128, 128) layout.

    A shift of +b pixels in the row-major flattened image is one lane roll
    plus a per-lane select against the one-sublane-down copy (carry across
    the 128-lane boundary).  Wraparound at the image boundary only touches
    positions whose static weight is 0.
    """
    S = d.shape[1]
    down = pltpu.roll(d, shift=S - 1, axis=1) if S > 1 else d   # d[n + 128]
    lane = lax.broadcasted_iota(jnp.int32, (1, 1, 128), 2)      # hoisted once
    taps = []
    for b in (1, W - 1, W, W + 1):                # linear offsets of _DIRS
        carry = jnp.where(lane < b, down, d)      # pre-roll carry merge
        taps.append(pltpu.roll(carry, shift=128 - b, axis=2))
    return taps


def _make_partial_kernel(make_taps):
    def kernel(w_ref, out_ref, lab_ref, part_ref):
        # (o - l) folds contrast(o) - contrast(l): one subtract per tap.
        d = out_ref[...].astype(jnp.float32) - lab_ref[...].astype(jnp.float32)
        w = w_ref[...]                             # (4, ...) static weights
        sq = None
        for k, s in enumerate(make_taps(d)):
            t = s - d
            c = (t * t) * w[k]                     # weight broadcasts over batch
            sq = c if sq is None else sq + c       # first tap seeds accumulator
        # Lane-dense (1, 8, 128) splat store; wrapper reads element [b, 0, 0].
        part_ref[...] = jnp.broadcast_to(jnp.sum(sq), part_ref.shape).astype(jnp.float32)
    return kernel


def contrast_depth_loss(out, label):
    """Pallas TPU implementation of Contrast_depth_loss.forward.

    out, label: (B, H, W) arrays (float32 or bfloat16). Returns a scalar f32.
    """
    assert out.shape == label.shape, (out.shape, label.shape)
    B, H, W = out.shape
    if H < 3 or W < 3:
        raise ValueError(f"contrast_depth_loss needs H >= 3 and W >= 3, got {(H, W)}")
    L = H * W

    # Static {0,1,2} weights for the folded directions:
    #   w_dir(q) = [q is interior center] + [q + dir is interior center].
    # `interior`'s border ring is zero, so np.roll's wraparound is exact.
    interior = np.zeros((H, W), np.float32)
    interior[1:H - 1, 1:W - 1] = 1.0
    weights_np = np.stack(
        [interior + np.roll(interior, (-dr, -dc), axis=(0, 1)) for dr, dc in _DIRS])

    # Lane packing: use full 128-lane vregs whenever the image flattens cleanly.
    packed = (L % 128 == 0) and (W + 1 < 128)
    if packed:
        S = L // 128
        out_v = out.reshape(B, S, 128)             # contiguous reshape: free
        lab_v = label.reshape(B, S, 128)
        weights = jnp.asarray(weights_np.reshape(4, S, 128))
        kernel = _make_partial_kernel(lambda d: _packed_taps(d, W))
        blk = (S, 128)
    else:
        out_v, lab_v = out, label
        weights = jnp.asarray(weights_np)
        kernel = _make_partial_kernel(lambda d: _plain_taps(d, H, W))
        blk = (H, W)

    # Batch tile: ~2 MiB of f32 pixels per input block, but keep >= 2
    # (>= 4 when B allows) grid steps so v7x's two TensorCores and the DMA
    # pipeline both engage.  (B == 1 cannot be split across cores.)
    tb = max(1, min(B, _BLOCK_PIXELS // L, pl.cdiv(B, 4)))
    num_blocks = pl.cdiv(B, tb)
    b_pad = num_blocks * tb
    if b_pad != B:
        pad = ((0, b_pad - B), (0, 0), (0, 0))
        out_v = jnp.pad(out_v, pad)                # zero pad contributes exactly 0
        lab_v = jnp.pad(lab_v, pad)

    partials = pl.pallas_call(
        kernel,
        out_shape=jax.ShapeDtypeStruct((num_blocks, 8, 128), jnp.float32),
        grid_spec=pltpu.PrefetchScalarGridSpec(
            num_scalar_prefetch=0,
            grid=(num_blocks,),
            in_specs=[
                pl.BlockSpec((4,) + blk, lambda b: (0, 0, 0)),   # static weights (DMA'd once)
                pl.BlockSpec((tb,) + blk, lambda b: (b, 0, 0)),
                pl.BlockSpec((tb,) + blk, lambda b: (b, 0, 0)),
            ],
            out_specs=pl.BlockSpec((1, 8, 128), lambda b: (b, 0, 0)),
        ),
        compiler_params=pltpu.CompilerParams(
            dimension_semantics=("parallel",),      # independent per-block partials
            vmem_limit_bytes=48 * 1024 * 1024,      # explicit cap: safe on v5e/v6e/v7x
        ),
    )(weights, out_v, lab_v)

    total = jnp.sum(partials[:, 0, 0])
    denom = jnp.float32(B * 8 * (H - 2) * (W - 2))  # original (unpadded) B
    return total / denom


# ----------------------------------------------------------------------------
# Pure-JAX reference (matches the PyTorch module exactly) and self-test.
# ----------------------------------------------------------------------------
_NEIGHBOR_OFFSETS = ((0, 0), (0, 1), (0, 2),
                     (1, 0), (1, 2),
                     (2, 0), (2, 1), (2, 2))


def _reference_contrast_depth_loss(out, label):
    def contrast(x):
        _, H, W = x.shape
        center = x[:, 1:H - 1, 1:W - 1]
        maps = [x[:, du:du + H - 2, dv:dv + W - 2] - center
                for (du, dv) in _NEIGHBOR_OFFSETS]
        return jnp.stack(maps, axis=1)             # (B, 8, H-2, W-2)
    co = contrast(out.astype(jnp.float32))
    cl = contrast(label.astype(jnp.float32))
    return jnp.mean((co - cl) ** 2)


if __name__ == "__main__":
    key = jax.random.PRNGKey(0)
    k1, k2 = jax.random.split(key)
    B, H, W = 2, 32, 32                            # docstring: 32x32 depth maps
    out = jax.random.uniform(k1, (B, H, W), dtype=jnp.float32)
    label = jax.random.uniform(k2, (B, H, W), dtype=jnp.float32)

    loss = contrast_depth_loss(out, label)
    loss = jax.block_until_ready(loss)

    ref = _reference_contrast_depth_loss(out, label)
    assert jnp.allclose(loss, ref, rtol=1e-4, atol=1e-6), (loss, ref)

    print("KERNEL_OK")
</pallas_src>

<mosaic_0001>
module attributes {stable_mosaic.version = 11 : i64} {
  func.func @kernel(%arg0: i32, %arg1: memref<4x8x128xf32, #tpu.memory_space<vmem>>, %arg2: memref<1x8x128xf32, #tpu.memory_space<vmem>>, %arg3: memref<1x8x128xf32, #tpu.memory_space<vmem>>, %arg4: memref<1x8x128xf32, #tpu.memory_space<vmem>>) attributes {dimension_semantics = [#tpu.dimension_semantics<parallel>], iteration_bounds = array<i64: 2>, scalar_prefetch = 0 : i64, scratch_operands = 0 : i64, tpu.core_type = #tpu.core_type<tc>, window_params = [{pipeline_mode = #tpu.pipeline_mode<synchronous>, transform_indices = @transform_0, window_bounds = array<i64: 4, 8, 128>}, {transform_indices = @transform_1, window_bounds = array<i64: 1, 8, 128>}, {transform_indices = @transform_2, window_bounds = array<i64: 1, 8, 128>}, {transform_indices = @transform_3, window_bounds = array<i64: 1, 8, 128>}]} {
    %c0 = arith.constant 0 : index
    %c0_0 = arith.constant 0 : index
    %c0_1 = arith.constant 0 : index
    %0 = vector.load %arg2[%c0, %c0_0, %c0_1] : memref<1x8x128xf32, #tpu.memory_space<vmem>>, vector<1x8x128xf32>
    %c0_2 = arith.constant 0 : index
    %c0_3 = arith.constant 0 : index
    %c0_4 = arith.constant 0 : index
    %1 = vector.load %arg3[%c0_2, %c0_3, %c0_4] : memref<1x8x128xf32, #tpu.memory_space<vmem>>, vector<1x8x128xf32>
    %2 = arith.subf %0, %1 : vector<1x8x128xf32>
    %c0_5 = arith.constant 0 : index
    %c0_6 = arith.constant 0 : index
    %c0_7 = arith.constant 0 : index
    %3 = vector.load %arg1[%c0_5, %c0_6, %c0_7] : memref<4x8x128xf32, #tpu.memory_space<vmem>>, vector<4x8x128xf32>
    %c7_i32 = arith.constant 7 : i32
    %4 = tpu.dynamic_rotate %2 by %c7_i32 dim 1 : vector<1x8x128xf32>, i32 -> vector<1x8x128xf32>
    %5 = tpu.iota {dimensions = array<i32: 2>} : vector<1x1x128xi32>
    %c1_i32 = arith.constant 1 : i32
    %6 = vector.broadcast %c1_i32 : i32 to vector<1x1x128xi32>
    %7 = arith.cmpi slt, %5, %6 : vector<1x1x128xi32>
    %8 = vector.shape_cast %7 : vector<1x1x128xi1> to vector<1x1x128xi1>
    %9 = vector.broadcast %8 : vector<1x1x128xi1> to vector<1x8x128xi1>
    %10 = arith.select %9, %4, %2 : vector<1x8x128xi1>, vector<1x8x128xf32>
    %c127_i32 = arith.constant 127 : i32
    %11 = tpu.dynamic_rotate %10 by %c127_i32 dim 2 : vector<1x8x128xf32>, i32 -> vector<1x8x128xf32>
    %c31_i32 = arith.constant 31 : i32
    %12 = vector.broadcast %c31_i32 : i32 to vector<1x1x128xi32>
    %13 = arith.cmpi slt, %5, %12 : vector<1x1x128xi32>
    %14 = vector.shape_cast %13 : vector<1x1x128xi1> to vector<1x1x128xi1>
    %15 = vector.broadcast %14 : vector<1x1x128xi1> to vector<1x8x128xi1>
    %16 = arith.select %15, %4, %2 : vector<1x8x128xi1>, vector<1x8x128xf32>
    %c97_i32 = arith.constant 97 : i32
    %17 = tpu.dynamic_rotate %16 by %c97_i32 dim 2 : vector<1x8x128xf32>, i32 -> vector<1x8x128xf32>
    %c32_i32 = arith.constant 32 : i32
    %18 = vector.broadcast %c32_i32 : i32 to vector<1x1x128xi32>
    %19 = arith.cmpi slt, %5, %18 : vector<1x1x128xi32>
    %20 = vector.shape_cast %19 : vector<1x1x128xi1> to vector<1x1x128xi1>
    %21 = vector.broadcast %20 : vector<1x1x128xi1> to vector<1x8x128xi1>
    %22 = arith.select %21, %4, %2 : vector<1x8x128xi1>, vector<1x8x128xf32>
    %c96_i32 = arith.constant 96 : i32
    %23 = tpu.dynamic_rotate %22 by %c96_i32 dim 2 : vector<1x8x128xf32>, i32 -> vector<1x8x128xf32>
    %c33_i32 = arith.constant 33 : i32
    %24 = vector.broadcast %c33_i32 : i32 to vector<1x1x128xi32>
    %25 = arith.cmpi slt, %5, %24 : vector<1x1x128xi32>
    %26 = vector.shape_cast %25 : vector<1x1x128xi1> to vector<1x1x128xi1>
    %27 = vector.broadcast %26 : vector<1x1x128xi1> to vector<1x8x128xi1>
    %28 = arith.select %27, %4, %2 : vector<1x8x128xi1>, vector<1x8x128xf32>
    %c95_i32 = arith.constant 95 : i32
    %29 = tpu.dynamic_rotate %28 by %c95_i32 dim 2 : vector<1x8x128xf32>, i32 -> vector<1x8x128xf32>
    %30 = arith.subf %11, %2 : vector<1x8x128xf32>
    %31 = arith.mulf %30, %30 : vector<1x8x128xf32>
    %32 = vector.extract_strided_slice %3 {offsets = [0, 0, 0], sizes = [1, 8, 128], strides = [1, 1, 1]} : vector<4x8x128xf32> to vector<1x8x128xf32>
    %33 = vector.shape_cast %32 : vector<1x8x128xf32> to vector<8x128xf32>
    %34 = vector.shape_cast %33 : vector<8x128xf32> to vector<1x8x128xf32>
    %35 = arith.mulf %31, %34 : vector<1x8x128xf32>
    %36 = arith.subf %17, %2 : vector<1x8x128xf32>
    %37 = arith.mulf %36, %36 : vector<1x8x128xf32>
    %38 = vector.extract_strided_slice %3 {offsets = [1, 0, 0], sizes = [1, 8, 128], strides = [1, 1, 1]} : vector<4x8x128xf32> to vector<1x8x128xf32>
    %39 = vector.shape_cast %38 : vector<1x8x128xf32> to vector<8x128xf32>
    %40 = vector.shape_cast %39 : vector<8x128xf32> to vector<1x8x128xf32>
    %41 = arith.mulf %37, %40 : vector<1x8x128xf32>
    %42 = arith.addf %35, %41 : vector<1x8x128xf32>
    %43 = arith.subf %23, %2 : vector<1x8x128xf32>
    %44 = arith.mulf %43, %43 : vector<1x8x128xf32>
    %45 = vector.extract_strided_slice %3 {offsets = [2, 0, 0], sizes = [1, 8, 128], strides = [1, 1, 1]} : vector<4x8x128xf32> to vector<1x8x128xf32>
    %46 = vector.shape_cast %45 : vector<1x8x128xf32> to vector<8x128xf32>
    %47 = vector.shape_cast %46 : vector<8x128xf32> to vector<1x8x128xf32>
    %48 = arith.mulf %44, %47 : vector<1x8x128xf32>
    %49 = arith.addf %42, %48 : vector<1x8x128xf32>
    %50 = arith.subf %29, %2 : vector<1x8x128xf32>
    %51 = arith.mulf %50, %50 : vector<1x8x128xf32>
    %52 = vector.extract_strided_slice %3 {offsets = [3, 0, 0], sizes = [1, 8, 128], strides = [1, 1, 1]} : vector<4x8x128xf32> to vector<1x8x128xf32>
    %53 = vector.shape_cast %52 : vector<1x8x128xf32> to vector<8x128xf32>
    %54 = vector.shape_cast %53 : vector<8x128xf32> to vector<1x8x128xf32>
    %55 = arith.mulf %51, %54 : vector<1x8x128xf32>
    %56 = arith.addf %49, %55 : vector<1x8x128xf32>
    %57 = vector.shape_cast %56 : vector<1x8x128xf32> to vector<1x1x8x128xf32>
    %cst = arith.constant dense<0.000000e+00> : vector<1xf32>
    %58 = vector.multi_reduction <add>, %57, %cst [1, 2, 3] : vector<1x1x8x128xf32> to vector<1xf32>
    %59 = vector.shape_cast %58 : vector<1xf32> to vector<1x1x1x1xf32>
    %60 = vector.extract %59[0, 0, 0, 0] : f32 from vector<1x1x1x1xf32>
    %61 = vector.broadcast %60 : f32 to vector<1x8x128xf32>
    %c0_8 = arith.constant 0 : index
    %c0_9 = arith.constant 0 : index
    %c0_10 = arith.constant 0 : index
    %62 = vector.load %arg4[%c0_8, %c0_9, %c0_10] : memref<1x8x128xf32, #tpu.memory_space<vmem>>, vector<1x8x128xf32>
    tpu.vector_store %arg4[%c0_8, %c0_9, %c0_10], %61 {strides = array<i32>} : memref<1x8x128xf32, #tpu.memory_space<vmem>>, vector<1x8x128xf32>,
    return
  }
  func.func @transform_0(%arg0: i32) -> (i32, i32, i32) {
    %c0_i32 = arith.constant 0 : i32
    %c0_i32_0 = arith.constant 0 : i32
    %c0_i32_1 = arith.constant 0 : i32
    %c0_i32_2 = arith.constant 0 : i32
    return %c0_i32, %c0_i32_0, %c0_i32_1 : i32, i32, i32
  }
  func.func @transform_1(%arg0: i32) -> (i32, i32, i32) {
    %c0_i32 = arith.constant 0 : i32
    %c0_i32_0 = arith.constant 0 : i32
    %c0_i32_1 = arith.constant 0 : i32
    return %arg0, %c0_i32, %c0_i32_0 : i32, i32, i32
  }
  func.func @transform_2(%arg0: i32) -> (i32, i32, i32) {
    %c0_i32 = arith.constant 0 : i32
    %c0_i32_0 = arith.constant 0 : i32
    %c0_i32_1 = arith.constant 0 : i32
    return %arg0, %c0_i32, %c0_i32_0 : i32, i32, i32
  }
  func.func @transform_3(%arg0: i32) -> (i32, i32, i32) {
    %c0_i32 = arith.constant 0 : i32
    %c0_i32_0 = arith.constant 0 : i32
    %c0_i32_1 = arith.constant 0 : i32
    return %arg0, %c0_i32, %c0_i32_0 : i32, i32, i32
  }
}

</mosaic_0001>

<llo_original>
// kernel: tpu_custom_call.1
$region0: #{tpu_custom_call.1}
  #allocation0 [shape = 'u32[]', space=smem, size = 0x4, offset = 0x4, fixed_abs, tag = 'smem constant byte address 0x4 - core index']
  #allocation1 [shape = 'u32[144,128]{1,0:T(1,128)}', space=vmem, size = 0x12000, scoped, tag = 'internal scratch']
  %s0 = inlined_call_operand.hbm [shape: f32[4,8,128], index: 0, kind: input, shape index: {}]
  %s1 = inlined_call_operand.hbm [shape: f32[2,8,128], index: 1, kind: input, shape index: {}]
  %s2 = inlined_call_operand.hbm [shape: f32[2,8,128], index: 2, kind: input, shape index: {}]
  %s3 = inlined_call_operand.hbm [shape: f32[2,8,128], index: 3, kind: output, shape index: {}]
  %s4 = sld [smem:[#allocation0]]
  $region57: #{tpu_custom_call.1} parent=0
    _
  %s6 = ssub.s32 1, %s4
  %s7 = scalar_select 0, %s6, %s4
  $region1: #{tpu_custom_call.1} parent=0
    #allocation2 [shape = 'u8[16384]{0}', space=vmem, size = 0x4000, scoped, tag = 'input window, operand 0, single buffered']
    #allocation3 [shape = 's32[2]{0}', space=sflag, size = 0x8, scoped, tag = 'scoped memory for tpu_custom_call.1']
    #allocation4 [shape = 's32[2]{0}', space=sflag, size = 0x8, scoped, tag = 'scoped memory for tpu_custom_call.1']
    #allocation5 [shape = 'u8[8192]{0}', space=vmem, size = 0x2000, scoped, tag = 'input window, operand 1']
    #allocation6 [shape = 's32[2]{0}', space=sflag, size = 0x8, scoped, tag = 'scoped memory for tpu_custom_call.1']
    #allocation7 [shape = 'u8[8192]{0}', space=vmem, size = 0x2000, scoped, tag = 'input window, operand 2']
    #allocation8 [shape = 'u8[8192]{0}', space=vmem, size = 0x2000, scoped, tag = 'output window, operand 0']
    %8 = vsyncpa [#allocation3], 0
    %9 = vsyncpa [#allocation6], 0
    %s10 = scalar_lea.sflag [#allocation6], 1
    %11 = vsyncpa %s10, 0
    %12 = vsyncpa [#allocation4], 0
    %s13 = scalar_lea.sflag [#allocation4], 1
    %14 = vsyncpa %s13, 0
    loop: start=0, step=1, limit=4
    $region2: #{tpu_custom_call.1} parent=1 // loop_pre_header
      _
    $region3: #{tpu_custom_call.1} parent=1 // loop_header
      %s16 = sphi 0, %s20
      %p17 = scmp.ge.s32.totalorder %s16, 4
      %s24 = sphi 0, %s24
      %s26 = sphi 0, %s24
      %s27 = sphi 0, %s26
      %s41 = sphi 0, %s27
      %s47 = sphi 0, %s49
      %s50 = sphi 0, %s47
      %s51 = sphi 0, %s50
      %s67 = sphi 0, %s51
      %s73 = sphi 0, %s75
      %s76 = sphi 0, %s73
      %s77 = sphi 0, %s76
      %s93 = sphi 0, %s77
      %s99 = sphi 0, %s101
      %s102 = sphi 0, %s99
      %s103 = sphi 0, %s102
      %s119 = sphi 0, %s103
    $region4: #{tpu_custom_call.1} parent=1 // loop_header_branch
      %19 = sbr.rel (%p17) target = $region8
    $region5: #{tpu_custom_call.1} parent=1 // loop_body
      %s21 = ssub.s32 %s16, 1
      %s22 = ssub.s32 %s16, 2
      %s23 = sadd.s32 %s16, 1
      %s25 = sadd.s32 %s24, 1
      %p28 = scmp.eq.s32.totalorder %s16, 1
      %p29 = scmp.ne.s32.totalorder %s24, %s26
      %p30 = scmp.eq.s32.totalorder %s16, 0
      %p31 = por %p29, %p30
      %p32 = scmp.ne.s32.totalorder %s24, %s26
      %p33 = scmp.eq.s32.totalorder %s21, 1
      %p34 = por %p32, %p33
      %p35 = scmp.ne.s32.totalorder %s26, %s27
      %p36 = scmp.eq.s32.totalorder %s21, 0
      %p37 = por %p35, %p36
      %p38 = scmp.ne.s32.totalorder %s26, %s27
      %p39 = scmp.eq.s32.totalorder %s22, 1
      %p40 = por %p38, %p39
      %p42 = scmp.ne.s32.totalorder %s27, %s41
      %p43 = scmp.eq.s32.totalorder %s22, 0
      %p44 = por %p42, %p43
      %s45 = ssub.s32 %s16, %s23
      %p46 = scmp.eq.s32.totalorder %s45, 0
      %s48 = sadd.s32 %s47, 1
      %s49 = scalar_select %p46, %s47, %s48
      %p52 = pneg %p46
      %p53 = scmp.eq.s32.totalorder %s16, 1
      %p54 = por %p52, %p53
      %p55 = scmp.ne.s32.totalorder %s47, %s50
      %p56 = scmp.eq.s32.totalorder %s16, 0
      %p57 = por %p55, %p56
      %p58 = scmp.ne.s32.totalorder %s47, %s50
      %p59 = scmp.eq.s32.totalorder %s21, 1
      %p60 = por %p58, %p59
      %p61 = scmp.ne.s32.totalorder %s50, %s51
      %p62 = scmp.eq.s32.totalorder %s21, 0
      %p63 = por %p61, %p62
      %p64 = scmp.ne.s32.totalorder %s50, %s51
      %p65 = scmp.eq.s32.totalorder %s22, 1
      %p66 = por %p64, %p65
      %p68 = scmp.ne.s32.totalorder %s51, %s67
      %p69 = scmp.eq.s32.totalorder %s22, 0
      %p70 = por %p68, %p69
      %s71 = ssub.s32 %s16, %s23
      %p72 = scmp.eq.s32.totalorder %s71, 0
      %s74 = sadd.s32 %s73, 1
      %s75 = scalar_select %p72, %s73, %s74
      %p78 = pneg %p72
      %p79 = scmp.eq.s32.totalorder %s16, 1
      %p80 = por %p78, %p79
      %p81 = scmp.ne.s32.totalorder %s73, %s76
      %p82 = scmp.eq.s32.totalorder %s16, 0
      %p83 = por %p81, %p82
      %p84 = scmp.ne.s32.totalorder %s73, %s76
      %p85 = scmp.eq.s32.totalorder %s21, 1
      %p86 = por %p84, %p85
      %p87 = scmp.ne.s32.totalorder %s76, %s77
      %p88 = scmp.eq.s32.totalorder %s21, 0
      %p89 = por %p87, %p88
      %p90 = scmp.ne.s32.totalorder %s76, %s77
      %p91 = scmp.eq.s32.totalorder %s22, 1
      %p92 = por %p90, %p91
      %p94 = scmp.ne.s32.totalorder %s77, %s93
      %p95 = scmp.eq.s32.totalorder %s22, 0
      %p96 = por %p94, %p95
      %s97 = ssub.s32 %s16, %s23
      %p98 = scmp.eq.s32.totalorder %s97, 0
      %s100 = sadd.s32 %s99, 1
      %s101 = scalar_select %p98, %s99, %s100
      %p104 = pneg %p98
      %p105 = scmp.eq.s32.totalorder %s16, 1
      %p106 = por %p104, %p105
      %p107 = scmp.ne.s32.totalorder %s99, %s102
      %p108 = scmp.eq.s32.totalorder %s16, 0
      %p109 = por %p107, %p108
      %p110 = scmp.ne.s32.totalorder %s99, %s102
      %p111 = scmp.eq.s32.totalorder %s21, 1
      %p112 = por %p110, %p111
      %p113 = scmp.ne.s32.totalorder %s102, %s103
      %p114 = scmp.eq.s32.totalorder %s21, 0
      %p115 = por %p113, %p114
      %p116 = scmp.ne.s32.totalorder %s102, %s103
      %p117 = scmp.eq.s32.totalorder %s22, 1
      %p118 = por %p116, %p117
      %p120 = scmp.ne.s32.totalorder %s103, %s119
      %p121 = scmp.eq.s32.totalorder %s22, 0
      %p122 = por %p120, %p121
      %p123 = scmp.le.s32.totalorder 1, %s16
      %p124 = scmp.lt.s32.totalorder %s16, 3
      %p125 = pnand %p123, %p124
      %p126 = pneg %p125
      // Predicated region
      $region9: #{tpu_custom_call.1} parent=5 // pred_check
        _
      $region10: #{tpu_custom_call.1} parent=5 // pred_check_branch
        %128 = sbr.rel (%p125) target = $region12
      $region11: #{tpu_custom_call.1} parent=5 // pred_region
        %s129 = ssub.s32 %s16, 1
        // Predicated region
        $region13: #{tpu_custom_call.1} parent=11 // pred_check
          %p130 = pneg %p37
        $region14: #{tpu_custom_call.1} parent=11 // pred_check_branch
          %132 = sbr.rel (%p130) target = $region16
        $region15: #{tpu_custom_call.1} parent=11 // pred_region
          %s134 = ssub.s32 512, 512
          %135 = vsyncadd [#allocation3], %s134
          %s136 = sshll.u32 [#allocation2], 4
          %s137 = int_to_ptr.vmem [resolvable:$true] %s136
          %142 = dma.hbm_to_vmem [thread:$0]  %s0, 512, %s137, [#allocation3], 128, 128, 8
        $region16: #{tpu_custom_call.1} parent=11 // pred_fallthru
          _
      $region12: #{tpu_custom_call.1} parent=5 // pred_fallthru
        _
      %p143 = scmp.lt.s32.totalorder %s16, 2
      // Predicated region
      $region17: #{tpu_custom_call.1} parent=5 // pred_check
        %p144 = pneg %p143
      $region18: #{tpu_custom_call.1} parent=5 // pred_check_branch
        %146 = sbr.rel (%p144) target = $region20
      $region19: #{tpu_custom_call.1} parent=5 // pred_region
        // Predicated region
        $region21: #{tpu_custom_call.1} parent=19 // pred_check
          %p147 = pneg %p57
        $region22: #{tpu_custom_call.1} parent=19 // pred_check_branch
          %149 = sbr.rel (%p147) target = $region24
        $region23: #{tpu_custom_call.1} parent=19 // pred_region
          %s150 = sand.u32 %s16, 1
          %s151 = scalar_lea.sflag [#allocation6], %s150
          %s152 = sand.u32 %s47, 1
          %s153 = smul.addr %s152, 8
          %s154 = scalar_lea.vmem [#allocation5], %s153
          %s156 = ssub.s32 128, 128
          %157 = vsyncadd %s151, %s156
          %s158 = smul.addr %s16, 128
          %s159 = scalar_lea.hbm %s1, %s158
          %s161 = sshll.u32 %s154, 4
          %s162 = int_to_ptr.vmem [resolvable:$true] %s161
          %164 = dma.hbm_to_vmem [thread:$0]  %s159, 128, %s162, %s151
        $region24: #{tpu_custom_call.1} parent=19 // pred_fallthru
          _
        // Predicated region
        $region25: #{tpu_custom_call.1} parent=19 // pred_check
          %p165 = pneg %p83
        $region26: #{tpu_custom_call.1} parent=19 // pred_check_branch
          %167 = sbr.rel (%p165) target = $region28
        $region27: #{tpu_custom_call.1} parent=19 // pred_region
          %s168 = sand.u32 %s16, 1
          %s169 = scalar_lea.sflag [#allocation6], %s168
          %s170 = sand.u32 %s73, 1
          %s171 = smul.addr %s170, 8
          %s172 = scalar_lea.vmem [#allocation7], %s171
          %s174 = ssub.s32 128, 128
          %175 = vsyncadd %s169, %s174
          %s176 = smul.addr %s16, 128
          %s177 = scalar_lea.hbm %s2, %s176
          %s179 = sshll.u32 %s172, 4
          %s180 = int_to_ptr.vmem [resolvable:$true] %s179
          %182 = dma.hbm_to_vmem [thread:$0]  %s177, 128, %s180, %s169
        $region28: #{tpu_custom_call.1} parent=19 // pred_fallthru
          _
      $region20: #{tpu_custom_call.1} parent=5 // pred_fallthru
        _
      %p183 = scmp.le.s32.totalorder 1, %s16
      %p184 = scmp.lt.s32.totalorder %s16, 3
      %p185 = pnand %p183, %p184
      %p186 = pneg %p185
      // Predicated region
      $region29: #{tpu_custom_call.1} parent=5 // pred_check
        _
      $region30: #{tpu_custom_call.1} parent=5 // pred_check_branch
        %188 = sbr.rel (%p185) target = $region32
      $region31: #{tpu_custom_call.1} parent=5 // pred_region
        %s189 = ssub.s32 %s16, 1
        // Predicated region
        $region33: #{tpu_custom_call.1} parent=31 // pred_check
          %p190 = pneg %p37
        $region34: #{tpu_custom_call.1} parent=31 // pred_check_branch
          %192 = sbr.rel (%p190) target = $region36
        $region35: #{tpu_custom_call.1} parent=31 // pred_region
          %193 = dma.done [#allocation3], 512
        $region36: #{tpu_custom_call.1} parent=31 // pred_fallthru
          _
        %s194 = sand.u32 %s21, 1
        %s195 = scalar_lea.sflag [#allocation6], %s194
        %s196 = sand.u32 %s50, 1
        %s197 = smul.addr %s196, 8
        %s198 = scalar_lea.vmem [#allocation5], %s197
        // Predicated region
        $region37: #{tpu_custom_call.1} parent=31 // pred_check
          %p199 = pneg %p63
        $region38: #{tpu_custom_call.1} parent=31 // pred_check_branch
          %201 = sbr.rel (%p199) target = $region40
        $region39: #{tpu_custom_call.1} parent=31 // pred_region
          %202 = dma.done %s195, 128
        $region40: #{tpu_custom_call.1} parent=31 // pred_fallthru
          _
        %s203 = sand.u32 %s21, 1
        %s204 = scalar_lea.sflag [#allocation6], %s203
        %s205 = sand.u32 %s76, 1
        %s206 = smul.addr %s205, 8
        %s207 = scalar_lea.vmem [#allocation7], %s206
        // Predicated region
        $region41: #{tpu_custom_call.1} parent=31 // pred_check
          %p208 = pneg %p89
        $region42: #{tpu_custom_call.1} parent=31 // pred_check_branch
          %210 = sbr.rel (%p208) target = $region44
        $region43: #{tpu_custom_call.1} parent=31 // pred_region
          %211 = dma.done %s204, 128
        $region44: #{tpu_custom_call.1} parent=31 // pred_fallthru
          _
        %p212 = pneg %p37
        %p213 = pneg %p34
        %s214 = sand.u32 %s21, 1
        %s215 = scalar_lea.sflag [#allocation6], %s214
        %s216 = sand.u32 %s50, 1
        %s217 = smul.addr %s216, 8
        %s218 = scalar_lea.vmem [#allocation5], %s217
        %p219 = pneg %p63
        %p220 = pneg %p60
        %s221 = sand.u32 %s21, 1
        %s222 = scalar_lea.sflag [#allocation6], %s221
        %s223 = sand.u32 %s76, 1
        %s224 = smul.addr %s223, 8
        %s225 = scalar_lea.vmem [#allocation7], %s224
        %p226 = pneg %p89
        %p227 = pneg %p86
        %p228 = pneg %p115
        %p229 = pneg %p112
        %s230 = sand.u32 %s102, 1
        %s231 = scalar_lea.sflag [#allocation4], %s230
        %s232 = sand.u32 %s102, 1
        %s233 = smul.addr %s232, 8
        %s234 = scalar_lea.vmem [#allocation8], %s233
        %v235 = vld [vmem:[%s198] sm:$0xff]
        %v236 = vld [vmem:[%s207] sm:$0xff]
        %v237 = vsub.f32 %v235, %v236
        %v238 = vld [vmem:[#allocation2] sm:$0xff]
        %v239 = vld [vmem:[#allocation2 + $0x8] sm:$0xff]
        %v240 = vld [vmem:[#allocation2 + $0x10] sm:$0xff]
        %v241 = vld [vmem:[#allocation2 + $0x18] sm:$0xff]
        %v242 = vrot.slane %v237, 1
        %v243 = vlaneseq
        %v244 = vand.u32 %v243, 127
        %vm245 = vcmp.lt.s32.totalorder %v244, 1
        %v246 = vsel %vm245, 1, 0
        %vm247 = vcmp.eq.s32.totalorder %v246, 1
        %v248 = vsel %vm247, %v242, %v237
        %249 = vrot.lane.b32.xlu0 %v248, 127
        %v250 = vpop.permute.xlu0 %249
        %vm251 = vcmp.lt.s32.totalorder %v244, 31
        %v252 = vsel %vm251, 1, 0
        %vm253 = vcmp.eq.s32.totalorder %v252, 1
        %v254 = vsel %vm253, %v242, %v237
        %255 = vrot.lane.b32.xlu0 %v254, 97
        %v256 = vpop.permute.xlu0 %255
        %vm257 = vcmp.lt.s32.totalorder %v244, 32
        %v258 = vsel %vm257, 1, 0
        %vm259 = vcmp.eq.s32.totalorder %v258, 1
        %v260 = vsel %vm259, %v242, %v237
        %261 = vrot.lane.b32.xlu0 %v260, 96
        %v262 = vpop.permute.xlu0 %261
        %vm263 = vcmp.lt.s32.totalorder %v244, 33
        %v264 = vsel %vm263, 1, 0
        %vm265 = vcmp.eq.s32.totalorder %v264, 1
        %v266 = vsel %vm265, %v242, %v237
        %267 = vrot.lane.b32.xlu0 %v266, 95
        %v268 = vpop.permute.xlu0 %267
        %v269 = vsub.f32 %v250, %v237
        %v270 = vmul.f32 %v269, %v269
        %v271 = vmul.f32 %v270, %v238
        %v272 = vsub.f32 %v256, %v237
        %v273 = vmul.f32 %v272, %v272
        %v274 = vmul.f32 %v273, %v239
        %v275 = vadd.f32 %v271, %v274
        %v276 = vsub.f32 %v262, %v237
        %v277 = vmul.f32 %v276, %v276
        %v278 = vmul.f32 %v277, %v240
        %v279 = vadd.f32 %v275, %v278
        %v280 = vsub.f32 %v268, %v237
        %v281 = vmul.f32 %v280, %v280
        %v282 = vmul.f32 %v281, %v241
        %v283 = vadd.f32 %v279, %v282
        %284 = vadd.xlane.f32.xlu0 %v283
        %v285 = vpop.xlane.xlu0 %284
        %v286 = vrot.slane %v285, 4
        %v287 = vadd.f32 %v285, %v286
        %v288 = vrot.slane %v287, 2
        %v289 = vadd.f32 %v287, %v288
        %v290 = vrot.slane %v289, 1
        %v291 = vadd.f32 %v289, %v290
        %s292 = vtos %v291
        %v293 = vstv %s292
        %294 = vst [vmem:[%s234] sm:$0xff] %v293
        %s295 = sand.u32 %s102, 1
        %s296 = scalar_lea.sflag [#allocation4], %s295
        %s297 = sand.u32 %s102, 1
        %s298 = smul.addr %s297, 8
        %s299 = scalar_lea.vmem [#allocation8], %s298
        // Predicated region
        $region45: #{tpu_custom_call.1} parent=31 // pred_check
          %p300 = pneg %p112
        $region46: #{tpu_custom_call.1} parent=31 // pred_check_branch
          %302 = sbr.rel (%p300) target = $region48
        $region47: #{tpu_custom_call.1} parent=31 // pred_region
          %s304 = ssub.s32 128, 128
          %305 = vsyncadd %s296, %s304
          %s306 = smul.addr %s21, 128
          %s307 = scalar_lea.hbm %s3, %s306
          %s309 = sshll.u32 %s299, 4
          %s310 = int_to_ptr.vmem [resolvable:$true] %s309
          %312 = dma.vmem_to_hbm [thread:$0]  %s310, 128, %s307, %s296
        $region48: #{tpu_custom_call.1} parent=31 // pred_fallthru
          _
      $region32: #{tpu_custom_call.1} parent=5 // pred_fallthru
        _
      %p313 = scmp.le.s32.totalorder 2, %s16
      // Predicated region
      $region49: #{tpu_custom_call.1} parent=5 // pred_check
        %p314 = pneg %p313
      $region50: #{tpu_custom_call.1} parent=5 // pred_check_branch
        %316 = sbr.rel (%p314) target = $region52
      $region51: #{tpu_custom_call.1} parent=5 // pred_region
        %s317 = ssub.s32 %s16, 2
        // Predicated region
        $region53: #{tpu_custom_call.1} parent=51 // pred_check
          %p318 = pneg %p118
        $region54: #{tpu_custom_call.1} parent=51 // pred_check_branch
          %320 = sbr.rel (%p318) target = $region56
        $region55: #{tpu_custom_call.1} parent=51 // pred_region
          %s321 = sand.u32 %s103, 1
          %s322 = scalar_lea.sflag [#allocation4], %s321
          %s323 = sand.u32 %s103, 1
          %s324 = smul.addr %s323, 8
          %s325 = scalar_lea.vmem [#allocation8], %s324
          %326 = dma.done %s322, 128
        $region56: #{tpu_custom_call.1} parent=51 // pred_fallthru
          _
      $region52: #{tpu_custom_call.1} parent=5 // pred_fallthru
        _
    $region6: #{tpu_custom_call.1} parent=1 // loop_footer
      %s20 = sadd.s32 1, %s16
    $region7: #{tpu_custom_call.1} parent=1 // loop_footer_branch
      %15 = sbr.rel target = $region3
    $region8: #{tpu_custom_call.1} parent=1 // loop_exit
      _
    %327 = vsyncpa [#allocation3], 1
    %s328 = scalar_lea.sflag [#allocation3], 1
    %329 = vsyncpa %s328, 1
    %330 = vsyncpa [#allocation6], 1
    %s331 = scalar_lea.sflag [#allocation6], 1
    %332 = vsyncpa %s331, 1
    %333 = vsyncpa [#allocation4], 1
    %s334 = scalar_lea.sflag [#allocation4], 1
    %335 = vsyncpa %s334, 1

</llo_original>
